<compile_context>
chip_gen: v5e
topology: v5e:2x2
jax: 0.10.0
libtpu: 0.0.40
codegen_flags: <defaults>
</compile_context>

<pallas_src>
import jax
import jax.numpy as jnp
from jax.experimental import pallas as pl
from jax.experimental.pallas import tpu as pltpu

ANGLE_NUM = 8500
EMBED_LEN = 32


def _round_up(x, m):
    return (x + m - 1) // m * m


def _xrd_attention_kernel(q_ref, m_ref, kv_ref, embt_ref, out_ref, acc_ref):
    # q_ref:    (1, tq)    scaled intensity, q tile (lane-dense row)
    # m_ref:    (1, tq)    exact per-row softmax max (precomputed, rank-1 trick)
    # kv_ref:   (tk, 1)    scaled intensity, kv tile (sublane column)
    # embt_ref: (E+1, tk)  transposed angle embeddings + validity/ones row
    # out_ref:  (E, tq)    attended features, channels-first
    # acc_ref:  (E+1, tq)  f32 accumulator: rows :E numerator, row E denominator
    ki = pl.program_id(2)
    e = out_ref.shape[0]

    @pl.when(ki == 0)
    def _init():
        acc_ref[...] = jnp.zeros_like(acc_ref)

    # Unnormalized transposed softmax tile: p[k, q] = exp(s_k*s_q - m_q) <= 1.
    p = jnp.exp(kv_ref[...] * q_ref[...] - m_ref[...])          # (tk, tq)

    # Single MXU matmul accumulates numerator (rows :E) AND denominator (row E,
    # via the validity/ones row; zero on padded kv columns -> padding is exact).
    acc_ref[...] += jnp.dot(embt_ref[...], p,
                            preferred_element_type=jnp.float32)

    @pl.when(ki == pl.num_programs(2) - 1)
    def _finalize():
        acc = acc_ref[...]
        inv = pl.reciprocal(acc[e:e + 1, :], approx=True)       # (1, tq), EUP
        out_ref[...] = (acc[:e, :] * inv).astype(out_ref.dtype)


def xrd_attention_base(intensity, angle, embed_table):
    """JAX/Pallas equivalent of XrdAttentionBase.forward (pre-ResTcn stage).

    Returns the channels-first feature map (B, E, L), i.e. exactly what the
    PyTorch module feeds to `self.conv` after `x.transpose(1, 2)`.
    """
    B = intensity.shape[0]
    s = intensity.reshape(B, -1).astype(jnp.float32) / 100.0       # (B, L)
    L = s.shape[1]
    E = embed_table.shape[1]
    angle = angle.reshape(B, -1).astype(jnp.int32)                 # (B, L)

    # Rank-1 scores -> exact per-row softmax max from two O(L) reductions plus
    # one O(L) elementwise pass (exact for any sign of s).
    gmax = jnp.max(s, axis=-1, keepdims=True)
    gmin = jnp.min(s, axis=-1, keepdims=True)
    m = jnp.maximum(s * gmax, s * gmin)                            # (B, L)

    # Embedding gather + channels-first layout (+ validity/ones row used by the
    # kernel as the MXU-computed softmax denominator / padding mask).
    embt = jnp.swapaxes(embed_table[angle], 1, 2)                  # (B, E, L)
    valid = jnp.ones((B, 1, L), jnp.float32)
    embt_aug = jnp.concatenate([embt, valid], axis=1)              # (B, E+1, L)

    # Tile sizes / padding.  tq=256 keeps output stores lane-dense, tk=512
    # keeps the per-step (tk, tq) p-tile at 512 KiB (fits v7x's 64 MiB VMEM
    # with large headroom); small L collapses to a single (8,128)-aligned tile.
    l128 = _round_up(L, 128)
    if l128 <= 512:
        tq = tk = l_pad = l128
    else:
        tq, tk = 256, 512
        l_pad = _round_up(L, tk)
    pad = l_pad - L

    s_pad = jnp.pad(s, ((0, 0), (0, pad)))                         # zeros
    m_pad = jnp.pad(m, ((0, 0), (0, pad)))
    q_row = s_pad[:, None, :]                                      # (B, 1, Lp)
    m_row = m_pad[:, None, :]                                      # (B, 1, Lp)
    kv_col = s_pad[:, :, None]                                     # (B, Lp, 1)
    embt_aug = jnp.pad(embt_aug, ((0, 0), (0, 0), (0, pad)))       # (B,E+1,Lp)

    grid = (B, l_pad // tq, l_pad // tk)

    out = pl.pallas_call(
        _xrd_attention_kernel,
        out_shape=jax.ShapeDtypeStruct((B, E, l_pad), jnp.float32),
        grid_spec=pltpu.PrefetchScalarGridSpec(
            num_scalar_prefetch=0,
            grid=grid,
            in_specs=[
                pl.BlockSpec((None, 1, tq), lambda b, qi, ki: (b, 0, qi)),
                pl.BlockSpec((None, 1, tq), lambda b, qi, ki: (b, 0, qi)),
                pl.BlockSpec((None, tk, 1), lambda b, qi, ki: (b, ki, 0)),
                pl.BlockSpec((None, E + 1, tk), lambda b, qi, ki: (b, 0, ki)),
            ],
            out_specs=pl.BlockSpec((None, E, tq), lambda b, qi, ki: (b, 0, qi)),
            scratch_shapes=[pltpu.VMEM((E + 1, tq), jnp.float32)],
        ),
        compiler_params=pltpu.CompilerParams(
            dimension_semantics=("parallel", "parallel", "arbitrary"),
            vmem_limit_bytes=32 * 1024 * 1024,
        ),
    )(q_row, m_row, kv_col, embt_aug)                              # (B, E, Lp)

    x = out[:, :, :L]                                              # (B, E, L)
    # TODO(synk): ResTcn(embed_len) is referenced by the module but its class
    # definition is not provided in the source; the conv stage is omitted and
    # the pre-conv channels-first feature map (B, E, L) is returned.
    return x


def _reference(intensity, angle, embed_table):
    """Pure-JAX reference of the same forward (for validation)."""
    B = intensity.shape[0]
    s = intensity.reshape(B, -1).astype(jnp.float32) / 100.0
    angle = angle.reshape(B, -1).astype(jnp.int32)
    scores = s[:, :, None] * s[:, None, :]
    atten = jax.nn.softmax(scores, axis=-1)
    x = jnp.einsum("bqk,bke->bqe", atten, embed_table[angle],
                   precision=jax.lax.Precision.HIGHEST)
    return jnp.swapaxes(x, 1, 2)


if __name__ == "__main__":
    key = jax.random.PRNGKey(0)
    k_emb, k_int, k_ang = jax.random.split(key, 3)

    # Deterministic parameter init: nn.Embedding(ANGLE_NUM, 32) ~ N(0, 1)
    embed_table = jax.random.normal(k_emb, (ANGLE_NUM, EMBED_LEN),
                                    dtype=jnp.float32)

    fwd = jax.jit(xrd_attention_base)

    # Small demo shapes: batch=2, sequence (num angle bins) = 8.
    B, L = 2, 8
    intensity = jax.random.uniform(k_int, (B, L), dtype=jnp.float32) * 100.0
    angle = jax.random.randint(k_ang, (B, L), 0, ANGLE_NUM, dtype=jnp.int32)

    out = jax.block_until_ready(fwd(intensity, angle, embed_table))
    ref = jax.block_until_ready(_reference(intensity, angle, embed_table))
    assert out.shape == (B, EMBED_LEN, L)
    assert bool(jnp.allclose(out, ref, rtol=1e-2, atol=1e-3)), \
        float(jnp.max(jnp.abs(out - ref)))

    # Multi-tile / padded path: L=600 -> tq=256, tk=512, grid=(2, 4, 2).
    B2, L2 = 2, 600
    k_int2, k_ang2 = jax.random.split(k_ang)
    intensity2 = jax.random.uniform(k_int2, (B2, L2), dtype=jnp.float32) * 100.0
    angle2 = jax.random.randint(k_ang2, (B2, L2), 0, ANGLE_NUM, dtype=jnp.int32)

    out2 = jax.block_until_ready(fwd(intensity2, angle2, embed_table))
    ref2 = jax.block_until_ready(_reference(intensity2, angle2, embed_table))
    assert out2.shape == (B2, EMBED_LEN, L2)
    assert bool(jnp.allclose(out2, ref2, rtol=1e-2, atol=1e-3)), \
        float(jnp.max(jnp.abs(out2 - ref2)))

    print("KERNEL_OK")
</pallas_src>

<mosaic_0001>
module attributes {stable_mosaic.version = 11 : i64} {
  func.func @_xrd_attention_kernel(%arg0: i32, %arg1: i32, %arg2: i32, %arg3: memref<1x1x128xf32, #tpu.memory_space<vmem>>, %arg4: memref<1x1x128xf32, #tpu.memory_space<vmem>>, %arg5: memref<1x128x1xf32, #tpu.memory_space<vmem>>, %arg6: memref<1x33x128xf32, #tpu.memory_space<vmem>>, %arg7: memref<1x32x128xf32, #tpu.memory_space<vmem>>, %arg8: memref<33x128xf32, #tpu.memory_space<vmem>>) attributes {dimension_semantics = [#tpu.dimension_semantics<parallel>, #tpu.dimension_semantics<parallel>, #tpu.dimension_semantics<arbitrary>], iteration_bounds = array<i64: 2, 1, 1>, scalar_prefetch = 0 : i64, scratch_operands = 1 : i64, tpu.core_type = #tpu.core_type<tc>, window_params = [{transform_indices = @transform_0, window_bounds = array<i64: 1, 1, 128>}, {transform_indices = @transform_1, window_bounds = array<i64: 1, 1, 128>}, {transform_indices = @transform_2, window_bounds = array<i64: 1, 128, 1>}, {transform_indices = @transform_3, window_bounds = array<i64: 1, 33, 128>}, {transform_indices = @transform_4, window_bounds = array<i64: 1, 32, 128>}]} {
    %c0_i32 = arith.constant 0 : i32
    %0 = arith.cmpi eq, %arg2, %c0_i32 : i32
    %1 = arith.extui %0 : i1 to i32
    %c0_i32_0 = arith.constant 0 : i32
    %2 = arith.cmpi ne, %1, %c0_i32_0 : i32
    scf.if %2 {
      %cst_18 = arith.constant 0.000000e+00 : f32
      %24 = vector.broadcast %cst_18 : f32 to vector<33x128xf32>
      %c0_19 = arith.constant 0 : index
      %c0_20 = arith.constant 0 : index
      %25 = vector.load %arg8[%c0_19, %c0_20] : memref<33x128xf32, #tpu.memory_space<vmem>>, vector<33x128xf32>
      tpu.vector_store %arg8[%c0_19, %c0_20], %24 {strides = array<i32>} : memref<33x128xf32, #tpu.memory_space<vmem>>, vector<33x128xf32>,
    } else {
    }
    %c0 = arith.constant 0 : index
    %c0_1 = arith.constant 0 : index
    %c0_2 = arith.constant 0 : index
    %3 = vector.load %arg5[%c0, %c0_1, %c0_2] : memref<1x128x1xf32, #tpu.memory_space<vmem>>, vector<1x128x1xf32>
    %4 = vector.shape_cast %3 : vector<1x128x1xf32> to vector<128x1xf32>
    %c0_3 = arith.constant 0 : index
    %c0_4 = arith.constant 0 : index
    %c0_5 = arith.constant 0 : index
    %5 = vector.load %arg3[%c0_3, %c0_4, %c0_5] : memref<1x1x128xf32, #tpu.memory_space<vmem>>, vector<1x1x128xf32>
    %6 = vector.shape_cast %5 : vector<1x1x128xf32> to vector<1x128xf32>
    %7 = vector.broadcast %4 : vector<128x1xf32> to vector<128x128xf32>
    %8 = vector.broadcast %6 : vector<1x128xf32> to vector<128x128xf32>
    %9 = arith.mulf %7, %8 : vector<128x128xf32>
    %c0_6 = arith.constant 0 : index
    %c0_7 = arith.constant 0 : index
    %c0_8 = arith.constant 0 : index
    %10 = vector.load %arg4[%c0_6, %c0_7, %c0_8] : memref<1x1x128xf32, #tpu.memory_space<vmem>>, vector<1x1x128xf32>
    %11 = vector.shape_cast %10 : vector<1x1x128xf32> to vector<1x128xf32>
    %12 = vector.broadcast %11 : vector<1x128xf32> to vector<128x128xf32>
    %13 = arith.subf %9, %12 : vector<128x128xf32>
    %14 = math.exp %13 : vector<128x128xf32>
    %c0_9 = arith.constant 0 : index
    %c0_10 = arith.constant 0 : index
    %15 = vector.load %arg8[%c0_9, %c0_10] : memref<33x128xf32, #tpu.memory_space<vmem>>, vector<33x128xf32>
    %c0_11 = arith.constant 0 : index
    %c0_12 = arith.constant 0 : index
    %c0_13 = arith.constant 0 : index
    %16 = vector.load %arg6[%c0_11, %c0_12, %c0_13] : memref<1x33x128xf32, #tpu.memory_space<vmem>>, vector<1x33x128xf32>
    %17 = vector.shape_cast %16 : vector<1x33x128xf32> to vector<33x128xf32>
    %cst = arith.constant dense<0.000000e+00> : vector<33x128xf32>
    %18 = tpu.matmul %17, %14, %cst {dimension_numbers = #tpu.dot_dimension_numbers<[1], [0], [0], [1], [0, 0, 1, 1], [], []>} : vector<33x128xf32>, vector<128x128xf32>, vector<33x128xf32> -> vector<33x128xf32>
    %19 = arith.addf %15, %18 : vector<33x128xf32>
    %c0_14 = arith.constant 0 : index
    %c0_15 = arith.constant 0 : index
    %20 = vector.load %arg8[%c0_14, %c0_15] : memref<33x128xf32, #tpu.memory_space<vmem>>, vector<33x128xf32>
    tpu.vector_store %arg8[%c0_14, %c0_15], %19 {strides = array<i32>} : memref<33x128xf32, #tpu.memory_space<vmem>>, vector<33x128xf32>,
    %c0_i32_16 = arith.constant 0 : i32
    %21 = arith.cmpi eq, %arg2, %c0_i32_16 : i32
    %22 = arith.extui %21 : i1 to i32
    %c0_i32_17 = arith.constant 0 : i32
    %23 = arith.cmpi ne, %22, %c0_i32_17 : i32
    scf.if %23 {
      %c0_18 = arith.constant 0 : index
      %c0_19 = arith.constant 0 : index
      %24 = vector.load %arg8[%c0_18, %c0_19] : memref<33x128xf32, #tpu.memory_space<vmem>>, vector<33x128xf32>
      %25 = vector.extract_strided_slice %24 {offsets = [32, 0], sizes = [1, 128], strides = [1, 1]} : vector<33x128xf32> to vector<1x128xf32>
      %26 = tpu.reciprocal %25 {approx = true} : vector<1x128xf32> -> vector<1x128xf32>
      %27 = vector.extract_strided_slice %24 {offsets = [0, 0], sizes = [32, 128], strides = [1, 1]} : vector<33x128xf32> to vector<32x128xf32>
      %28 = vector.broadcast %26 : vector<1x128xf32> to vector<32x128xf32>
      %29 = arith.mulf %27, %28 : vector<32x128xf32>
      %c0_20 = arith.constant 0 : index
      %c0_21 = arith.constant 0 : index
      %c0_22 = arith.constant 0 : index
      %30 = vector.load %arg7[%c0_20, %c0_21, %c0_22] : memref<1x32x128xf32, #tpu.memory_space<vmem>>, vector<1x32x128xf32>
      %31 = vector.shape_cast %30 : vector<1x32x128xf32> to vector<32x128xf32>
      %32 = vector.shape_cast %29 : vector<32x128xf32> to vector<1x32x128xf32>
      tpu.vector_store %arg7[%c0_20, %c0_21, %c0_22], %32 {strides = array<i32>} : memref<1x32x128xf32, #tpu.memory_space<vmem>>, vector<1x32x128xf32>,
    } else {
    }
    return
  }
  func.func @transform_0(%arg0: i32, %arg1: i32, %arg2: i32) -> (i32, i32, i32) {
    %c0_i32 = arith.constant 0 : i32
    %c0_i32_0 = arith.constant 0 : i32
    return %arg0, %c0_i32, %arg1 : i32, i32, i32
  }
  func.func @transform_1(%arg0: i32, %arg1: i32, %arg2: i32) -> (i32, i32, i32) {
    %c0_i32 = arith.constant 0 : i32
    %c0_i32_0 = arith.constant 0 : i32
    return %arg0, %c0_i32, %arg1 : i32, i32, i32
  }
  func.func @transform_2(%arg0: i32, %arg1: i32, %arg2: i32) -> (i32, i32, i32) {
    %c0_i32 = arith.constant 0 : i32
    %c0_i32_0 = arith.constant 0 : i32
    return %arg0, %arg2, %c0_i32 : i32, i32, i32
  }
  func.func @transform_3(%arg0: i32, %arg1: i32, %arg2: i32) -> (i32, i32, i32) {
    %c0_i32 = arith.constant 0 : i32
    %c0_i32_0 = arith.constant 0 : i32
    return %arg0, %c0_i32, %arg2 : i32, i32, i32
  }
  func.func @transform_4(%arg0: i32, %arg1: i32, %arg2: i32) -> (i32, i32, i32) {
    %c0_i32 = arith.constant 0 : i32
    %c0_i32_0 = arith.constant 0 : i32
    return %arg0, %c0_i32, %arg1 : i32, i32, i32
  }
}

</mosaic_0001>

<llo_original>
// kernel: xrd_attention_base.1
$region0: #{xrd_attention_base.1}
  #allocation0 [shape = 'u32[]', space=smem, size = 0x4, offset = 0x4, fixed_abs, tag = 'smem constant byte address 0x4 - core index']
  #allocation1 [shape = 'u32[72,128]{1,0:T(1,128)}', space=vmem, size = 0x9000, scoped, tag = 'internal scratch']
  #allocation2 [shape = 'f32[33,128]{1,0:T(8,128)}', space=vmem, size = 0x5000, scoped, tag = 'scratch operand']
  %s0 = inlined_call_operand.vmem [shape: f32[2,1,128], index: 0, kind: input, shape index: {}]
  %s1 = inlined_call_operand.vmem [shape: f32[2,1,128], index: 1, kind: input, shape index: {}]
  %s2 = inlined_call_operand.vmem [shape: f32[2,128,1], index: 2, kind: input, shape index: {}]
  %s3 = inlined_call_operand.vmem [shape: f32[2,33,128], index: 3, kind: input, shape index: {}]
  %s4 = inlined_call_operand.vmem [shape: f32[2,32,128], index: 4, kind: output, shape index: {}]
  %s5 = sld [smem:[#allocation0]]
  $region57: #{xrd_attention_base.1} parent=0
    _
  %s7 = ssub.s32 1, %s5
  %s8 = scalar_select 0, %s7, %s5
  loop: start=0, step=1, limit=4
  $region2: #{xrd_attention_base.1} parent=0 // loop_pre_header
    _
  $region3: #{xrd_attention_base.1} parent=0 // loop_header
    %s10 = sphi 0, %s14
    %p11 = scmp.ge.s32.totalorder %s10, 4
    %s17 = sphi 0, %s36
    %s18 = sphi 0, %s32
    %s19 = sphi 0, %s28
    %s20 = sphi 0, %s17
    %s21 = sphi 0, %s18
    %s22 = sphi 0, %s19
    %s23 = sphi 0, %s20
    %s24 = sphi 0, %s21
    %s25 = sphi 0, %s22
    %s41 = sphi 0, %s43
    %s44 = sphi 0, %s41
    %s45 = sphi 0, %s44
    %s61 = sphi 0, %s45
    %s69 = sphi 0, %s71
    %s72 = sphi 0, %s69
    %s73 = sphi 0, %s72
    %s89 = sphi 0, %s73
    %s97 = sphi 0, %s99
    %s100 = sphi 0, %s97
    %s101 = sphi 0, %s100
    %s117 = sphi 0, %s101
    %s125 = sphi 0, %s127
    %s128 = sphi 0, %s125
    %s129 = sphi 0, %s128
    %s145 = sphi 0, %s129
    %s153 = sphi 0, %s155
    %s156 = sphi 0, %s153
    %s157 = sphi 0, %s156
    %s173 = sphi 0, %s157
  $region4: #{xrd_attention_base.1} parent=0 // loop_header_branch
    %13 = sbr.rel (%p11) target = $region8
  $region5: #{xrd_attention_base.1} parent=0 // loop_body
    %s15 = ssub.s32 %s10, 1
    %s16 = ssub.s32 %s10, 2
    %s26 = sadd.s32 1, %s19
    %p27 = scmp.ge.s32.totalorder %s26, 1
    %s28 = scalar_select %p27, 0, %s26
    %s29 = sadd.s32 1, %s18
    %s30 = scalar_select %p27, %s29, %s18
    %p31 = scmp.ge.s32.totalorder %s30, 1
    %s32 = scalar_select %p31, 0, %s30
    %s33 = sadd.s32 1, %s17
    %s34 = scalar_select %p31, %s33, %s17
    %p35 = scmp.ge.s32.totalorder %s34, 2
    %s36 = scalar_select %p35, 0, %s34
    %s37 = ssub.s32 %s17, %s36
    %s38 = ssub.s32 %s18, %s32
    %s39 = sor.u32 %s37, %s38
    %p40 = scmp.eq.s32.totalorder %s39, 0
    %s42 = sadd.s32 %s41, 1
    %s43 = scalar_select %p40, %s41, %s42
    %p46 = pneg %p40
    %p47 = scmp.eq.s32.totalorder %s10, 1
    %p48 = por %p46, %p47
    %p49 = scmp.ne.s32.totalorder %s41, %s44
    %p50 = scmp.eq.s32.totalorder %s10, 0
    %p51 = por %p49, %p50
    %p52 = scmp.ne.s32.totalorder %s41, %s44
    %p53 = scmp.eq.s32.totalorder %s15, 1
    %p54 = por %p52, %p53
    %p55 = scmp.ne.s32.totalorder %s44, %s45
    %p56 = scmp.eq.s32.totalorder %s15, 0
    %p57 = por %p55, %p56
    %p58 = scmp.ne.s32.totalorder %s44, %s45
    %p59 = scmp.eq.s32.totalorder %s16, 1
    %p60 = por %p58, %p59
    %p62 = scmp.ne.s32.totalorder %s45, %s61
    %p63 = scmp.eq.s32.totalorder %s16, 0
    %p64 = por %p62, %p63
    %s65 = ssub.s32 %s17, %s36
    %s66 = ssub.s32 %s18, %s32
    %s67 = sor.u32 %s65, %s66
    %p68 = scmp.eq.s32.totalorder %s67, 0
    %s70 = sadd.s32 %s69, 1
    %s71 = scalar_select %p68, %s69, %s70
    %p74 = pneg %p68
    %p75 = scmp.eq.s32.totalorder %s10, 1
    %p76 = por %p74, %p75
    %p77 = scmp.ne.s32.totalorder %s69, %s72
    %p78 = scmp.eq.s32.totalorder %s10, 0
    %p79 = por %p77, %p78
    %p80 = scmp.ne.s32.totalorder %s69, %s72
    %p81 = scmp.eq.s32.totalorder %s15, 1
    %p82 = por %p80, %p81
    %p83 = scmp.ne.s32.totalorder %s72, %s73
    %p84 = scmp.eq.s32.totalorder %s15, 0
    %p85 = por %p83, %p84
    %p86 = scmp.ne.s32.totalorder %s72, %s73
    %p87 = scmp.eq.s32.totalorder %s16, 1
    %p88 = por %p86, %p87
    %p90 = scmp.ne.s32.totalorder %s73, %s89
    %p91 = scmp.eq.s32.totalorder %s16, 0
    %p92 = por %p90, %p91
    %s93 = ssub.s32 %s17, %s36
    %s94 = ssub.s32 %s19, %s28
    %s95 = sor.u32 %s93, %s94
    %p96 = scmp.eq.s32.totalorder %s95, 0
    %s98 = sadd.s32 %s97, 1
    %s99 = scalar_select %p96, %s97, %s98
    %p102 = pneg %p96
    %p103 = scmp.eq.s32.totalorder %s10, 1
    %p104 = por %p102, %p103
    %p105 = scmp.ne.s32.totalorder %s97, %s100
    %p106 = scmp.eq.s32.totalorder %s10, 0
    %p107 = por %p105, %p106
    %p108 = scmp.ne.s32.totalorder %s97, %s100
    %p109 = scmp.eq.s32.totalorder %s15, 1
    %p110 = por %p108, %p109
    %p111 = scmp.ne.s32.totalorder %s100, %s101
    %p112 = scmp.eq.s32.totalorder %s15, 0
    %p113 = por %p111, %p112
    %p114 = scmp.ne.s32.totalorder %s100, %s101
    %p115 = scmp.eq.s32.totalorder %s16, 1
    %p116 = por %p114, %p115
    %p118 = scmp.ne.s32.totalorder %s101, %s117
    %p119 = scmp.eq.s32.totalorder %s16, 0
    %p120 = por %p118, %p119
    %s121 = ssub.s32 %s17, %s36
    %s122 = ssub.s32 %s19, %s28
    %s123 = sor.u32 %s121, %s122
    %p124 = scmp.eq.s32.totalorder %s123, 0
    %s126 = sadd.s32 %s125, 1
    %s127 = scalar_select %p124, %s125, %s126
    %p130 = pneg %p124
    %p131 = scmp.eq.s32.totalorder %s10, 1
    %p132 = por %p130, %p131
    %p133 = scmp.ne.s32.totalorder %s125, %s128
    %p134 = scmp.eq.s32.totalorder %s10, 0
    %p135 = por %p133, %p134
    %p136 = scmp.ne.s32.totalorder %s125, %s128
    %p137 = scmp.eq.s32.totalorder %s15, 1
    %p138 = por %p136, %p137
    %p139 = scmp.ne.s32.totalorder %s128, %s129
    %p140 = scmp.eq.s32.totalorder %s15, 0
    %p141 = por %p139, %p140
    %p142 = scmp.ne.s32.totalorder %s128, %s129
    %p143 = scmp.eq.s32.totalorder %s16, 1
    %p144 = por %p142, %p143
    %p146 = scmp.ne.s32.totalorder %s129, %s145
    %p147 = scmp.eq.s32.totalorder %s16, 0
    %p148 = por %p146, %p147
    %s149 = ssub.s32 %s17, %s36
    %s150 = ssub.s32 %s18, %s32
    %s151 = sor.u32 %s149, %s150
    %p152 = scmp.eq.s32.totalorder %s151, 0
    %s154 = sadd.s32 %s153, 1
    %s155 = scalar_select %p152, %s153, %s154
    %p158 = pneg %p152
    %p159 = scmp.eq.s32.totalorder %s10, 1
    %p160 = por %p158, %p159
    %p161 = scmp.ne.s32.totalorder %s153, %s156
    %p162 = scmp.eq.s32.totalorder %s10, 0
    %p163 = por %p161, %p162
    %p164 = scmp.ne.s32.totalorder %s153, %s156
    %p165 = scmp.eq.s32.totalorder %s15, 1
    %p166 = por %p164, %p165
    %p167 = scmp.ne.s32.totalorder %s156, %s157
    %p168 = scmp.eq.s32.totalorder %s15, 0
    %p169 = por %p167, %p168
    %p170 = scmp.ne.s32.totalorder %s156, %s157
    %p171 = scmp.eq.s32.totalorder %s16, 1
    %p172 = por %p170, %p171
    %p174 = scmp.ne.s32.totalorder %s157, %s173
    %p175 = scmp.eq.s32.totalorder %s16, 0
    %p176 = por %p174, %p175
    %p177 = scmp.le.s32.totalorder 1, %s10
    %p178 = scmp.lt.s32.totalorder %s10, 3
    %p179 = pnand %p177, %p178
    %p180 = pneg %p179
    // Predicated region
    $region9: #{xrd_attention_base.1} parent=5 // pred_check
      _
    $region10: #{xrd_attention_base.1} parent=5 // pred_check_branch
      %182 = sbr.rel (%p179) target = $region12
    $region11: #{xrd_attention_base.1} parent=5 // pred_region
      %s183 = ssub.s32 %s10, 1
    $region12: #{xrd_attention_base.1} parent=5 // pred_fallthru
      _
    %p184 = scmp.lt.s32.totalorder %s10, 2
    // Predicated region
    $region13: #{xrd_attention_base.1} parent=5 // pred_check
      %p185 = pneg %p184
    $region14: #{xrd_attention_base.1} parent=5 // pred_check_branch
      %187 = sbr.rel (%p185) target = $region16
    $region15: #{xrd_attention_base.1} parent=5 // pred_region
      // Predicated region
      $region17: #{xrd_attention_base.1} parent=15 // pred_check
        %p188 = pneg %p51
      $region18: #{xrd_attention_base.1} parent=15 // pred_check_branch
        %190 = sbr.rel (%p188) target = $region20
      $region19: #{xrd_attention_base.1} parent=15 // pred_region
        %p191 = scmp.lt.s32.totalorder %s17, 1
        %s192 = scalar_select %p191, %s17, 1
        %p193 = scmp.lt.s32.totalorder %s18, 0
        %s194 = scalar_select %p193, %s18, 0
        %s195 = sadd.s32 %s194, %s192
        %s196 = scalar_lea.vmem %s0, %s195
      $region20: #{xrd_attention_base.1} parent=15 // pred_fallthru
        _
      // Predicated region
      $region21: #{xrd_attention_base.1} parent=15 // pred_check
        %p197 = pneg %p79
      $region22: #{xrd_attention_base.1} parent=15 // pred_check_branch
        %199 = sbr.rel (%p197) target = $region24
      $region23: #{xrd_attention_base.1} parent=15 // pred_region
        %p200 = scmp.lt.s32.totalorder %s17, 1
        %s201 = scalar_select %p200, %s17, 1
        %p202 = scmp.lt.s32.totalorder %s18, 0
        %s203 = scalar_select %p202, %s18, 0
        %s204 = sadd.s32 %s203, %s201
        %s205 = scalar_lea.vmem %s1, %s204
      $region24: #{xrd_attention_base.1} parent=15 // pred_fallthru
        _
      // Predicated region
      $region25: #{xrd_attention_base.1} parent=15 // pred_check
        %p206 = pneg %p107
      $region26: #{xrd_attention_base.1} parent=15 // pred_check_branch
        %208 = sbr.rel (%p206) target = $region28
      $region27: #{xrd_attention_base.1} parent=15 // pred_region
        %s209 = smul.u32 16, %s19
        %p210 = scmp.lt.s32.totalorder %s17, 1
        %s211 = scalar_select %p210, %s17, 1
        %p212 = scmp.lt.s32.totalorder %s209, 15
        %s213 = scalar_select %p212, %s209, 15
        %s214 = smul.addr %s211, 16
        %s215 = sadd.s32 %s213, %s214
        %s216 = smul.addr %s215, 8
        %s217 = scalar_lea.vmem %s2, %s216
        %s218 = smul.u32 16, %s19
      $region28: #{xrd_attention_base.1} parent=15 // pred_fallthru
        _
      // Predicated region
      $region29: #{xrd_attention_base.1} parent=15 // pred_check
        %p219 = pneg %p135
      $region30: #{xrd_attention_base.1} parent=15 // pred_check_branch
        %221 = sbr.rel (%p219) target = $region32
      $region31: #{xrd_attention_base.1} parent=15 // pred_region
        %p222 = scmp.lt.s32.totalorder %s17, 1
        %s223 = scalar_select %p222, %s17, 1
        %p224 = scmp.lt.s32.totalorder %s19, 0
        %s225 = scalar_select %p224, %s19, 0
        %s226 = smul.addr %s223, 5
        %s227 = sadd.s32 %s225, %s226
        %s228 = smul.addr %s227, 8
        %s229 = scalar_lea.vmem %s3, %s228
      $region32: #{xrd_attention_base.1} parent=15 // pred_fallthru
        _
    $region16: #{xrd_attention_base.1} parent=5 // pred_fallthru
      _
    %p230 = scmp.le.s32.totalorder 1, %s10
    %p231 = scmp.lt.s32.totalorder %s10, 3
    %p232 = pnand %p230, %p231
    %p233 = pneg %p232
    // Predicated region
    $region33: #{xrd_attention_base.1} parent=5 // pred_check
      _
    $region34: #{xrd_attention_base.1} parent=5 // pred_check_branch
      %235 = sbr.rel (%p232) target = $region36
    $region35: #{xrd_attention_base.1} parent=5 // pred_region
      %s236 = ssub.s32 %s10, 1
      %p237 = scmp.lt.s32.totalorder %s20, 1
      %s238 = scalar_select %p237, %s20, 1
      %p239 = scmp.lt.s32.totalorder %s21, 0
      %s240 = scalar_select %p239, %s21, 0
      %s241 = sadd.s32 %s240, %s238
      %s242 = scalar_lea.vmem %s0, %s241
      %p243 = pneg %p57
      %p244 = pneg %p54
      %p245 = scmp.lt.s32.totalorder %s20, 1
      %s246 = scalar_select %p245, %s20, 1
      %p247 = scmp.lt.s32.totalorder %s21, 0
      %s248 = scalar_select %p247, %s21, 0
      %s249 = sadd.s32 %s248, %s246
      %s250 = scalar_lea.vmem %s1, %s249
      %p251 = pneg %p85
      %p252 = pneg %p82
      %s253 = smul.u32 16, %s22
      %p254 = scmp.lt.s32.totalorder %s20, 1
      %s255 = scalar_select %p254, %s20, 1
      %p256 = scmp.lt.s32.totalorder %s253, 15
      %s257 = scalar_select %p256, %s253, 15
      %s258 = smul.addr %s255, 16
      %s259 = sadd.s32 %s257, %s258
      %s260 = smul.addr %s259, 8
      %s261 = scalar_lea.vmem %s2, %s260
      %p262 = pneg %p113
      %p263 = pneg %p110
      %p264 = scmp.lt.s32.totalorder %s20, 1
      %s265 = scalar_select %p264, %s20, 1
      %p266 = scmp.lt.s32.totalorder %s22, 0
      %s267 = scalar_select %p266, %s22, 0
      %s268 = smul.addr %s265, 5
      %s269 = sadd.s32 %s267, %s268
      %s270 = smul.addr %s269, 8
      %s271 = scalar_lea.vmem %s3, %s270
      %p272 = pneg %p141
      %p273 = pneg %p138
      %p274 = pneg %p169
      %p275 = pneg %p166
      %p276 = scmp.lt.s32.totalorder %s20, 1
      %s277 = scalar_select %p276, %s20, 1
      %p278 = scmp.lt.s32.totalorder %s21, 0
      %s279 = scalar_select %p278, %s21, 0
      %s280 = smul.addr %s277, 4
      %s281 = sadd.s32 %s279, %s280
      %s282 = smul.addr %s281, 8
      %s283 = scalar_lea.vmem %s4, %s282
      %p284 = scmp.lt.s32.totalorder %s20, 1
      %s285 = scalar_select %p284, %s20, 1
      %p286 = scmp.lt.s32.totalorder %s21, 0
      %s287 = scalar_select %p286, %s21, 0
      %s288 = sadd.s32 %s287, %s285
      %s289 = scalar_lea.vmem %s0, %s288
      %p290 = scmp.lt.s32.totalorder %s20, 1
      %s291 = scalar_select %p290, %s20, 1
      %p292 = scmp.lt.s32.totalorder %s21, 0
      %s293 = scalar_select %p292, %s21, 0
      %s294 = sadd.s32 %s293, %s291
      %s295 = scalar_lea.vmem %s1, %s294
      %s296 = smul.u32 16, %s22
      %p297 = scmp.lt.s32.totalorder %s20, 1
      %s298 = scalar_select %p297, %s20, 1
      %p299 = scmp.lt.s32.totalorder %s296, 15
      %s300 = scalar_select %p299, %s296, 15
      %s301 = smul.addr %s298, 16
      %s302 = sadd.s32 %s300, %s301
      %s303 = smul.addr %s302, 8
      %s304 = scalar_lea.vmem %s2, %s303
      %s305 = smul.u32 16, %s22
      %p306 = scmp.lt.s32.totalorder %s20, 1
      %s307 = scalar_select %p306, %s20, 1
      %p308 = scmp.lt.s32.totalorder %s22, 0
      %s309 = scalar_select %p308, %s22, 0
      %s310 = smul.addr %s307, 5
      %s311 = sadd.s32 %s309, %s310
      %s312 = smul.addr %s311, 8
      %s313 = scalar_lea.vmem %s3, %s312
      %p314 = scmp.lt.s32.totalorder %s20, 1
      %s315 = scalar_select %p314, %s20, 1
      %p316 = scmp.lt.s32.totalorder %s21, 0
      %s317 = scalar_select %p316, %s21, 0
      %s318 = smul.addr %s315, 4
      %s319 = sadd.s32 %s317, %s318
      %s320 = smul.addr %s319, 8
      %s321 = scalar_lea.vmem %s4, %s320
      %p322 = scmp.eq.s32.totalorder %s22, 0
      // Predicated region
      $region37: #{xrd_attention_base.1} parent=35 // pred_check
        %p323 = pneg %p322
      $region38: #{xrd_attention_base.1} parent=35 // pred_check_branch
        %325 = sbr.rel (%p323) target = $region40
      $region39: #{xrd_attention_base.1} parent=35 // pred_region
        %326 = vst [vmem:[#allocation2] sm:$0xff] 0.0
        %327 = vst [vmem:[#allocation2 + $0x8] sm:$0xff] 0.0
        %328 = vst [vmem:[#allocation2 + $0x10] sm:$0xff] 0.0
        %329 = vst [vmem:[#allocation2 + $0x18] sm:$0xff] 0.0
        %330 = vst [vmem:[#allocation2 + $0x20] sm:$0x1] 0.0
      $region40: #{xrd_attention_base.1} parent=35 // pred_fallthru
        _
      %v331 = vld [vmem:[%s304] sm:$0xff]
      %v332 = vld [vmem:[%s304 + $0x8] sm:$0xff]
      %v333 = vld [vmem:[%s304 + $0x10] sm:$0xff]
      %v334 = vld [vmem:[%s304 + $0x18] sm:$0xff]
      %v335 = vld [vmem:[%s304 + $0x20] sm:$0xff]
      %v336 = vld [vmem:[%s304 + $0x28] sm:$0xff]
      %v337 = vld [vmem:[%s304 + $0x30] sm:$0xff]
      %v338 = vld [vmem:[%s304 + $0x38] sm:$0xff]
      %v339 = vld [vmem:[%s304 + $0x40] sm:$0xff]
      %v340 = vld [vmem:[%s304 + $0x48] sm:$0xff]
      %v341 = vld [vmem:[%s304 + $0x50] sm:$0xff]
      %v342 = vld [vmem:[%s304 + $0x58] sm:$0xff]
      %v343 = vld [vmem:[%s304 + $0x60] sm:$0xff]
      %v344 = vld [vmem:[%s304 + $0x68] sm:$0xff]
      %v345 = vld [vmem:[%s304 + $0x70] sm:$0xff]
      %v346 = vld [vmem:[%s304 + $0x78] sm:$0xff]
      %v347 = vld [vmem:[%s289] sm:$0x1]
      %349 = vset.pattern.permute.xlu0 0
      %350 = vperm.xlu0 %349, %v331
      %v351 = vpop.permute.xlu0 %350
      %354 = vset.pattern.permute.xlu0 0
      %355 = vperm.xlu0 %354, %v332
      %v356 = vpop.permute.xlu0 %355
      %359 = vset.pattern.permute.xlu0 0
      %360 = vperm.xlu0 %359, %v333
      %v361 = vpop.permute.xlu0 %360
      %364 = vset.pattern.permute.xlu0 0
      %365 = vperm.xlu0 %364, %v334
      %v366 = vpop.permute.xlu0 %365
      %369 = vset.pattern.permute.xlu0 0
      %370 = vperm.xlu0 %369, %v335
      %v371 = vpop.permute.xlu0 %370
      %374 = vset.pattern.permute.xlu0 0
      %375 = vperm.xlu0 %374, %v336
      %v376 = vpop.permute.xlu0 %375
      %379 = vset.pattern.permute.xlu0 0
      %380 = vperm.xlu0 %379, %v337
      %v381 = vpop.permute.xlu0 %380
      %384 = vset.pattern.permute.xlu0 0
      %385 = vperm.xlu0 %384, %v338
      %v386 = vpop.permute.xlu0 %385
      %389 = vset.pattern.permute.xlu0 0
      %390 = vperm.xlu0 %389, %v339
      %v391 = vpop.permute.xlu0 %390
      %394 = vset.pattern.permute.xlu0 0
      %395 = vperm.xlu0 %394, %v340
      %v396 = vpop.permute.xlu0 %395
      %399 = vset.pattern.permute.xlu0 0
      %400 = vperm.xlu0 %399, %v341
      %v401 = vpop.permute.xlu0 %400
      %404 = vset.pattern.permute.xlu0 0
      %405 = vperm.xlu0 %404, %v342
      %v406 = vpop.permute.xlu0 %405
      %409 = vset.pattern.permute.xlu0 0
      %410 = vperm.xlu0 %409, %v343
      %v411 = vpop.permute.xlu0 %410
      %414 = vset.pattern.permute.xlu0 0
      %415 = vperm.xlu0 %414, %v344
      %v416 = vpop.permute.xlu0 %415
      %419 = vset.pattern.permute.xlu0 0
      %420 = vperm.xlu0 %419, %v345
      %v421 = vpop.permute.xlu0 %420
      %424 = vset.pattern.permute.xlu0 0
      %425 = vperm.xlu0 %424, %v346
      %v426 = vpop.permute.xlu0 %425
      %v429 = vperm.slane %v347, 0
      %v431 = vmul.f32 %v351, %v429
      %v432 = vmul.f32 %v356, %v429
      %v433 = vmul.f32 %v361, %v429
      %v434 = vmul.f32 %v366, %v429
      %v435 = vmul.f32 %v371, %v429
      %v436 = vmul.f32 %v376, %v429
      %v437 = vmul.f32 %v381, %v429
      %v438 = vmul.f32 %v386, %v429
      %v439 = vmul.f32 %v391, %v429
      %v440 = vmul.f32 %v396, %v429
      %v441 = vmul.f32 %v401, %v429
      %v442 = vmul.f32 %v406, %v429
      %v443 = vmul.f32 %v411, %v429
      %v444 = vmul.f32 %v416, %v429
      %v445 = vmul.f32 %v421, %v429
      %v446 = vmul.f32 %v426, %v429
      %v447 = vld [vmem:[%s295] sm:$0x1]
      %v449 = vperm.slane %v447, 0
      %v451 = vsub.f32 %v431, %v449
      %v452 = vsub.f32 %v432, %v449
      %v453 = vsub.f32 %v433, %v449
      %v454 = vsub.f32 %v434, %v449
      %v455 = vsub.f32 %v435, %v449
      %v456 = vsub.f32 %v436, %v449
      %v457 = vsub.f32 %v437, %v449
      %v458 = vsub.f32 %v438, %v449
      %v459 = vsub.f32 %v439, %v449
      %v460 = vsub.f32 %v440, %v449
      %v461 = vsub.f32 %v441, %v449
      %v462 = vsub.f32 %v442, %v449
      %v463 = vsub.f32 %v443, %v449
      %v464 = vsub.f32 %v444, %v449
      %v465 = vsub.f32 %v445, %v449
      %v466 = vsub.f32 %v446, %v449
      %v467 = vmul.f32 %v451, 1.442695
      %v468 = vpow.pop %v467
      %v469 = vmul.f32 %v452, 1.442695
      %v470 = vpow.pop %v469
      %v471 = vmul.f32 %v453, 1.442695
      %v472 = vpow.pop %v471
      %v473 = vmul.f32 %v454, 1.442695
      %v474 = vpow.pop %v473
      %v475 = vmul.f32 %v455, 1.442695
      %v476 = vpow.pop %v475
      %v477 = vmul.f32 %v456, 1.442695
      %v478 = vpow.pop %v477
      %v479 = vmul.f32 %v457, 1.442695
      %v480 = vpow.pop %v479
      %v481 = vmul.f32 %v458, 1.442695
      %v482 = vpow.pop %v481
      %v483 = vmul.f32 %v459, 1.442695
      %v484 = vpow.pop %v483
      %v485 = vmul.f32 %v460, 1.442695
      %v486 = vpow.pop %v485
      %v487 = vmul.f32 %v461, 1.442695
      %v488 = vpow.pop %v487
      %v489 = vmul.f32 %v462, 1.442695
      %v490 = vpow.pop %v489
      %v491 = vmul.f32 %v463, 1.442695
      %v492 = vpow.pop %v491
      %v493 = vmul.f32 %v464, 1.442695
      %v494 = vpow.pop %v493
      %v495 = vmul.f32 %v465, 1.442695
      %v496 = vpow.pop %v495
      %v497 = vmul.f32 %v466, 1.442695
      %v498 = vpow.pop %v497
      %v499 = vld [vmem:[#allocation2] sm:$0xff]
      %v500 = vld [vmem:[#allocation2 + $0x8] sm:$0xff]
      %v501 = vld [vmem:[#allocation2 + $0x10] sm:$0xff]
      %v502 = vld [vmem:[#allocation2 + $0x18] sm:$0xff]
      %v503 = vld [vmem:[#allocation2 + $0x20] sm:$0x1]
      %v504 = vld [vmem:[%s313] sm:$0xff]
      %v505 = vld [vmem:[%s313 + $0x8] sm:$0xff]
      %v506 = vld [vmem:[%s313 + $0x10] sm:$0xff]
      %v507 = vld [vmem:[%s313 + $0x18] sm:$0xff]
      %v508 = vld [vmem:[%s313 + $0x20] sm:$0x1]
      %509 = vmatpush.msra.mxu0 %v498
      %510 = vmatpush.msra.mxu0 %v496
      %511 = vmatpush.msra.mxu0 %v494
      %512 = vmatpush.msra.mxu0 %v492
      %513 = vmatpush.msra.mxu0 %v490
      %514 = vmatpush.msra.mxu0 %v488
      %515 = vmatpush.msra.mxu0 %v486
      %516 = vmatpush.msra.mxu0 %v484
      %517 = vmatpush.msra.mxu0 %v482
      %518 = vmatpush.msra.mxu0 %v480
      %519 = vmatpush.msra.mxu0 %v478
      %520 = vmatpush.msra.mxu0 %v476
      %521 = vmatpush.msra.mxu0 %v474
      %522 = vmatpush.msra.mxu0 %v472
      %523 = vmatpush.msra.mxu0 %v470
      %524 = vmatpush.msra.mxu0 %v468
      %525 = vmatmul.f32.gmra.mxu0 %v504
      %v526 = vpop.f32.mrf.mxu0
      %v527 = vadd.f32 0.0, %v526
      %528 = vmatmul.f32.gmra.mxu0 %v505
      %v529 = vpop.f32.mrf.mxu0
      %v530 = vadd.f32 0.0, %v529
      %531 = vmatmul.f32.gmra.mxu0 %v506
      %v532 = vpop.f32.mrf.mxu0
      %v533 = vadd.f32 0.0, %v532
      %534 = vmatmul.f32.gmra.mxu0 %v507
      %v535 = vpop.f32.mrf.mxu0
      %v536 = vadd.f32 0.0, %v535
      %537 = vmatmul.f32.gmra.mxu0 %v508
      %v538 = vpop.f32.mrf.mxu0
      %v539 = vadd.f32 0.0, %v538
      %540 = vdwg.mxu0
      %v541 = vadd.f32 %v499, %v527
      %v542 = vadd.f32 %v500, %v530
      %v543 = vadd.f32 %v501, %v533
      %v544 = vadd.f32 %v502, %v536
      %v545 = vadd.f32 %v503, %v539
      %546 = vst [vmem:[#allocation2] sm:$0xff] %v541
      %547 = vst [vmem:[#allocation2 + $0x8] sm:$0xff] %v542
      %548 = vst [vmem:[#allocation2 + $0x10] sm:$0xff] %v543
      %549 = vst [vmem:[#allocation2 + $0x18] sm:$0xff] %v544
      %550 = vst [vmem:[#allocation2 + $0x20] sm:$0x1] %v545
      // Predicated region
      $region41: #{xrd_attention_base.1} parent=35 // pred_check
        %p551 = pneg %p322
      $region42: #{xrd_attention_base.1} parent=35 // pred_check_branch
        %553 = sbr.rel (%p551) target = $region44
      $region43: #{xrd_attention_base.1} parent=35 // pred_region
        %v554 = vld [vmem:[#allocation2] sm:$0xff]
        %v555 = vld [vmem:[#allocation2 + $0x8] sm:$0xff]
        %v556 = vld [vmem:[#allocation2 + $0x10] sm:$0xff]
        %v557 = vld [vmem:[#allocation2 + $0x18] sm:$0xff]
        %v558 = vld [vmem:[#allocation2 + $0x20] sm:$0x1]
        %v559 = vrcp.pop %v558
        %v560 = vperm.slane %v559, 0
        %v561 = vmul.f32 %v554, %v560
        %v562 = vmul.f32 %v555, %v560
        %v563 = vmul.f32 %v556, %v560
        %v564 = vmul.f32 %v557, %v560
        %565 = vst [vmem:[%s321] sm:$0xff] %v561
        %566 = vst [vmem:[%s321 + $0x8] sm:$0xff] %v562
        %567 = vst [vmem:[%s321 + $0x10] sm:$0xff] %v563
        %568 = vst [vmem:[%s321 + $0x18] sm:$0xff] %v564
      $region44: #{xrd_attention_base.1} parent=35 // pred_fallthru
        _
      %p569 = scmp.lt.s32.totalorder %s20, 1
      %s570 = scalar_select %p569, %s20, 1
      %p571 = scmp.lt.s32.totalorder %s21, 0
      %s572 = scalar_select %p571, %s21, 0
      %s573 = smul.addr %s570, 4
      %s574 = sadd.s32 %s572, %s573
      %s575 = smul.addr %s574, 8
      %s576 = scalar_lea.vmem %s4, %s575
      // Predicated region
      $region45: #{xrd_attention_base.1} parent=35 // pred_check
        %p577 = pneg %p166
      $region46: #{xrd_attention_base.1} parent=35 // pred_check_branch
        %579 = sbr.rel (%p577) target = $region48
      $region47: #{xrd_attention_base.1} parent=35 // pred_region
        _
      $region48: #{xrd_attention_base.1} parent=35 // pred_fallthru
        _
    $region36: #{xrd_attention_base.1} parent=5 // pred_fallthru
      _
    %p580 = scmp.le.s32.totalorder 2, %s10
    // Predicated region
    $region49: #{xrd_attention_base.1} parent=5 // pred_check
      %p581 = pneg %p580
    $region50: #{xrd_attention_base.1} parent=5 // pred_check_branch
      %583 = sbr.rel (%p581) target = $region52
    $region51: #{xrd_attention_base.1} parent=5 // pred_region
      %s584 = ssub.s32 %s10, 2
      // Predicated region
      $region53: #{xrd_attention_base.1} parent=51 // pred_check
        %p585 = pneg %p172
      $region54: #{xrd_attention_base.1} parent=51 // pred_check_branch
        %587 = sbr.rel (%p585) target = $region56
      $region55: #{xrd_attention_base.1} parent=51 // pred_region
        %p588 = scmp.lt.s32.totalorder %s23, 1
        %s589 = scalar_select %p588, %s23, 1
        %p590 = scmp.lt.s32.totalorder %s24, 0
        %s591 = scalar_select %p590, %s24, 0
        %s592 = smul.addr %s589, 4
        %s593 = sadd.s32 %s591, %s592
        %s594 = smul.addr %s593, 8
        %s595 = scalar_lea.vmem %s4, %s594
      $region56: #{xrd_attention_base.1} parent=51 // pred_fallthru
        _
    $region52: #{xrd_attention_base.1} parent=5 // pred_fallthru
      _
  $region6: #{xrd_attention_base.1} parent=0 // loop_footer
    %s14 = sadd.s32 1, %s10
  $region7: #{xrd_attention_base.1} parent=0 // loop_footer_branch
    %9 = sbr.rel target = $region3
  $region8: #{xrd_attention_base.1} parent=0 // loop_exit
    _

</llo_original>
